<compile_context>
chip_gen: v5e
topology: v5e:2x2
jax: 0.10.0
libtpu: 0.0.40
codegen_flags: <defaults>
</compile_context>

<pallas_src>
import functools

import jax
import jax.numpy as jnp
from jax.experimental import pallas as pl
from jax.experimental.pallas import tpu as pltpu


def _gin_fused_kernel(adj_ref, x_ref, w_ref, aff_ref, out_ref, *,
                      num_layers, num_classes, apply_relu, apply_bn,
                      apply_logsoftmax, bn_eps, matmul_dtype):
    """One invocation computes the full GIN forward on whole-array VMEM blocks."""

    def gin_conv(x_f32, l):
        # GINConv(train_eps=False, eps=0): Linear(x + sum_{j in N(i)} x_j)
        #   == ((adj + I) @ x) @ W + b
        # adj_ref / w_ref already hold matmul_dtype; reload adj per layer (cheap
        # VMEM vld) instead of pinning it in vregs across the loop.
        b = aff_ref[l][0:1, :]                                   # [1, FP] f32
        h = jnp.dot(adj_ref[...], x_f32.astype(matmul_dtype),
                    preferred_element_type=jnp.float32)          # [N, FP] f32
        y = jnp.dot(h.astype(matmul_dtype), w_ref[l],
                    preferred_element_type=jnp.float32)          # [N, FP] f32
        return y + b

    def hidden_layer(l, x_f32):
        y = gin_conv(x_f32, l)
        if apply_relu:
            y = jnp.maximum(y, 0.0)
        if apply_bn:
            # BatchNorm1d (training mode): batch stats over the node dim,
            # biased variance (E[y^2] - E[y]^2), folded into one scale/shift.
            aff = aff_ref[l]                                     # [3, FP] f32
            gamma = aff[1:2, :]
            beta = aff[2:3, :]
            mean = jnp.mean(y, axis=0, keepdims=True)
            mean_sq = jnp.mean(y * y, axis=0, keepdims=True)
            var = jnp.maximum(mean_sq - mean * mean, 0.0)
            scale = gamma * jax.lax.rsqrt(var + bn_eps)
            y = y * scale + (beta - mean * scale)
        return y

    x = x_ref[...].astype(jnp.float32)                           # [N, FP]

    # proj layer + L hidden layers share the GINConv -> ReLU -> BN structure.
    x = jax.lax.fori_loop(0, num_layers - 1, hidden_layer, x)

    # Final GINConv (+ masked log_softmax over the first num_classes lanes).
    y = gin_conv(x, num_layers - 1)
    if apply_logsoftmax:
        col = jax.lax.broadcasted_iota(jnp.int32, y.shape, 1)
        valid = col < num_classes
        ym = jnp.where(valid, y, -jnp.inf)
        m = jnp.max(ym, axis=1, keepdims=True)
        s = ym - m
        lse = jnp.log(jnp.sum(jnp.where(valid, jnp.exp(s), 0.0),
                              axis=1, keepdims=True))
        y = jnp.where(valid, s - lse, 0.0)

    out_ref[...] = y.astype(out_ref.dtype)


def _pad2(a, rows, cols, dtype=jnp.float32):
    return jnp.pad(a.astype(jnp.float32),
                   ((0, rows - a.shape[0]), (0, cols - a.shape[1]))).astype(dtype)


def _pad1(v, cols):
    return jnp.pad(v.astype(jnp.float32), (0, cols - v.shape[0]))


def _vmem_capacity_bytes():
    """Generation-aware physical VMEM cap (falls back to the v7x 64 MiB floor)."""
    try:
        info = pltpu.get_tpu_info()
        cap = getattr(info, "vmem_capacity_bytes", None)
        if cap:
            return int(cap)
    except Exception:
        pass
    return 64 * 1024 * 1024


def gin_model_forward(x, edge_index, params, *, L=3, loss_type='nll',
                      non_linearity='relu', batch_norm=True,
                      lane_pad=128, matmul_dtype=jnp.bfloat16):
    n, _ = x.shape
    num_classes = params['final_w'].shape[1]
    num_layers = L + 2
    fp = lane_pad

    # TODO(synk): the edge_index -> dense adjacency scatter-add is data-dependent
    # and stays in plain JAX glue; for large N the dense O(N^2) adj should be
    # replaced by a scalar-prefetch (PrefetchScalarGridSpec) sparse aggregation.
    src, dst = edge_index[0], edge_index[1]
    adj_plus_i = (jnp.zeros((n, n), jnp.float32).at[dst, src].add(1.0)
                  + jnp.eye(n, dtype=jnp.float32))
    # NOTE: bf16 represents edge multiplicities exactly up to 256; for typical
    # graphs (0/1 adjacency + self loop) this is lossless.
    adj_in = adj_plus_i.astype(matmul_dtype)

    # Stack all layer parameters (proj, L conv layers, final) into two arrays.
    ws = [params['proj_w']] + list(params['layer_w']) + [params['final_w']]
    bs = [params['proj_b']] + list(params['layer_b']) + [params['final_b']]
    gammas = ([params['norm_gamma']] + list(params['bn_gamma'])
              + [jnp.ones((num_classes,), jnp.float32)])
    betas = ([params['norm_beta']] + list(params['bn_beta'])
             + [jnp.zeros((num_classes,), jnp.float32)])

    w_all = jnp.stack([_pad2(w, fp, fp, matmul_dtype) for w in ws])    # [NL, FP, FP]
    aff_all = jnp.stack([jnp.stack([_pad1(b, fp), _pad1(g, fp), _pad1(be, fp)])
                         for b, g, be in zip(bs, gammas, betas)])      # [NL, 3, FP] f32
    x_p = _pad2(x, n, fp, matmul_dtype)                                # [N, FP]

    kernel = functools.partial(
        _gin_fused_kernel,
        num_layers=num_layers,
        num_classes=num_classes,
        apply_relu=(non_linearity == 'relu'),
        apply_bn=batch_norm,
        apply_logsoftmax=(loss_type != 'mse'),
        bn_eps=1e-5,
        matmul_dtype=matmul_dtype,
    )

    # VMEM budget: single-buffered whole-array blocks (no grid => no 2x
    # double-buffering factor) + activation temporaries + headroom, capped at
    # the generation's physical VMEM.
    mm_itemsize = jnp.dtype(matmul_dtype).itemsize
    est = (n * n * mm_itemsize                       # adj (resident)
           + n * fp * mm_itemsize                    # x input
           + n * fp * 4                              # output
           + num_layers * fp * fp * mm_itemsize      # stacked weights
           + num_layers * 3 * fp * 4                 # stacked bias/gamma/beta
           + 3 * n * fp * 4                          # activation temporaries
           + (4 << 20))                              # compiler scratch headroom
    vmem_limit = int(min(max(est, 32 * 1024 * 1024), _vmem_capacity_bytes()))

    vmem = pl.BlockSpec(memory_space=pltpu.MemorySpace.VMEM)
    out_padded = pl.pallas_call(
        kernel,
        out_shape=jax.ShapeDtypeStruct((n, fp), jnp.float32),
        in_specs=[vmem] * 4,
        out_specs=vmem,
        compiler_params=pltpu.CompilerParams(vmem_limit_bytes=vmem_limit),
    )(adj_in, x_p, w_all, aff_all)

    return out_padded[:, :num_classes]


def _linear_init(key, fan_in, fan_out):
    # Deterministic init mimicking torch.nn.Linear's default uniform(-1/sqrt(fan_in), ..).
    bound = 1.0 / float(fan_in) ** 0.5
    kw, kb = jax.random.split(key)
    w = jax.random.uniform(kw, (fan_in, fan_out), jnp.float32, -bound, bound)
    b = jax.random.uniform(kb, (fan_out,), jnp.float32, -bound, bound)
    return w, b


if __name__ == "__main__":
    key = jax.random.PRNGKey(0)

    # NOTE: the reference model's forward only type-checks when
    # input_feature_dim == hidden_feature_dim (layers[0] is declared with
    # input_feature_dim but receives the hidden-dim output of proj_layer).
    N = 64            # number of graph nodes
    INPUT_DIM = 32
    HIDDEN_DIM = 32
    NUM_CLASSES = 4
    L = 3
    E = 256           # number of directed edges

    keys = jax.random.split(key, 8 + L)

    x = jax.random.normal(keys[0], (N, INPUT_DIM), jnp.float32)
    src = jax.random.randint(keys[1], (E,), 0, N)
    dst = jax.random.randint(keys[2], (E,), 0, N)
    edge_index = jnp.stack([src, dst]).astype(jnp.int32)

    params = {}
    params['proj_w'], params['proj_b'] = _linear_init(keys[3], INPUT_DIM, HIDDEN_DIM)
    params['norm_gamma'] = jnp.ones((HIDDEN_DIM,), jnp.float32)
    params['norm_beta'] = jnp.zeros((HIDDEN_DIM,), jnp.float32)

    layer_w, layer_b, bn_g, bn_b = [], [], [], []
    for l in range(L):
        fan_in = INPUT_DIM if l == 0 else HIDDEN_DIM
        w, b = _linear_init(keys[4 + l], fan_in, HIDDEN_DIM)
        layer_w.append(w)
        layer_b.append(b)
        bn_g.append(jnp.ones((HIDDEN_DIM,), jnp.float32))
        bn_b.append(jnp.zeros((HIDDEN_DIM,), jnp.float32))
    params['layer_w'] = layer_w
    params['layer_b'] = layer_b
    params['bn_gamma'] = bn_g
    params['bn_beta'] = bn_b

    params['final_w'], params['final_b'] = _linear_init(keys[4 + L], HIDDEN_DIM, NUM_CLASSES)

    out = gin_model_forward(x, edge_index, params, L=L, loss_type='nll',
                            non_linearity='relu', batch_norm=True)
    out = jax.block_until_ready(out)
    assert out.shape == (N, NUM_CLASSES)
    assert bool(jnp.all(jnp.isfinite(out)))
    # log_softmax rows must (approximately) sum to 1 in probability space.
    assert bool(jnp.all(jnp.abs(jnp.sum(jnp.exp(out), axis=1) - 1.0) < 1e-2))
    print("KERNEL_OK")
</pallas_src>

<mosaic_0001>
module attributes {stable_mosaic.version = 11 : i64} {
  func.func @_gin_fused_kernel(%arg0: memref<64x64xbf16, #tpu.memory_space<vmem>>, %arg1: memref<64x128xbf16, #tpu.memory_space<vmem>>, %arg2: memref<5x128x128xbf16, #tpu.memory_space<vmem>>, %arg3: memref<5x3x128xf32, #tpu.memory_space<vmem>>, %arg4: memref<64x128xf32, #tpu.memory_space<vmem>>) attributes {dimension_semantics = [], scalar_prefetch = 0 : i64, scratch_operands = 0 : i64, tpu.core_type = #tpu.core_type<tc>} {
    %c0 = arith.constant 0 : index
    %c0_0 = arith.constant 0 : index
    %0 = vector.load %arg1[%c0, %c0_0] : memref<64x128xbf16, #tpu.memory_space<vmem>>, vector<64x128xbf16>
    %1 = arith.extf %0 : vector<64x128xbf16> to vector<64x128xf32>
    %c0_i32 = arith.constant 0 : i32
    %c4_i32 = arith.constant 4 : i32
    %2 = arith.addi %c0_i32, %c4_i32 : i32
    %c1_i32 = arith.constant 1 : i32
    %3 = scf.for %arg5 = %c0_i32 to %2 step %c1_i32 iter_args(%arg6 = %1) -> (vector<64x128xf32>)  : i32 {
      %36 = arith.index_cast %arg5 : i32 to index
      %c0_18 = arith.constant 0 : index
      %c0_19 = arith.constant 0 : index
      %37 = vector.load %arg3[%36, %c0_18, %c0_19] : memref<5x3x128xf32, #tpu.memory_space<vmem>>, vector<1x3x128xf32>
      %38 = vector.shape_cast %37 : vector<1x3x128xf32> to vector<3x128xf32>
      %39 = vector.extract_strided_slice %38 {offsets = [0, 0], sizes = [1, 128], strides = [1, 1]} : vector<3x128xf32> to vector<1x128xf32>
      %c0_20 = arith.constant 0 : index
      %c0_21 = arith.constant 0 : index
      %40 = vector.load %arg0[%c0_20, %c0_21] : memref<64x64xbf16, #tpu.memory_space<vmem>>, vector<64x64xbf16>
      %41 = arith.truncf %arg6 : vector<64x128xf32> to vector<64x128xbf16>
      %cst_22 = arith.constant dense<0.000000e+00> : vector<64x128xf32>
      %42 = tpu.matmul %40, %41, %cst_22 {dimension_numbers = #tpu.dot_dimension_numbers<[1], [0], [0], [1], [0, 0, 1, 1], [], []>} : vector<64x64xbf16>, vector<64x128xbf16>, vector<64x128xf32> -> vector<64x128xf32>
      %43 = arith.truncf %42 : vector<64x128xf32> to vector<64x128xbf16>
      %44 = arith.index_cast %arg5 : i32 to index
      %c0_23 = arith.constant 0 : index
      %c0_24 = arith.constant 0 : index
      %45 = vector.load %arg2[%44, %c0_23, %c0_24] : memref<5x128x128xbf16, #tpu.memory_space<vmem>>, vector<1x128x128xbf16>
      %46 = vector.shape_cast %45 : vector<1x128x128xbf16> to vector<128x128xbf16>
      %cst_25 = arith.constant dense<0.000000e+00> : vector<64x128xf32>
      %47 = tpu.matmul %43, %46, %cst_25 {dimension_numbers = #tpu.dot_dimension_numbers<[1], [0], [0], [1], [0, 0, 1, 1], [], []>} : vector<64x128xbf16>, vector<128x128xbf16>, vector<64x128xf32> -> vector<64x128xf32>
      %48 = vector.broadcast %39 : vector<1x128xf32> to vector<64x128xf32>
      %49 = arith.addf %47, %48 : vector<64x128xf32>
      %cst_26 = arith.constant 0.000000e+00 : f32
      %50 = vector.broadcast %cst_26 : f32 to vector<64x128xf32>
      %51 = arith.maximumf %49, %50 : vector<64x128xf32>
      %52 = arith.index_cast %arg5 : i32 to index
      %c0_27 = arith.constant 0 : index
      %c0_28 = arith.constant 0 : index
      %53 = vector.load %arg3[%52, %c0_27, %c0_28] : memref<5x3x128xf32, #tpu.memory_space<vmem>>, vector<1x3x128xf32>
      %54 = vector.shape_cast %53 : vector<1x3x128xf32> to vector<3x128xf32>
      %55 = vector.extract_strided_slice %54 {offsets = [1, 0], sizes = [1, 128], strides = [1, 1]} : vector<3x128xf32> to vector<1x128xf32>
      %56 = vector.extract_strided_slice %54 {offsets = [2, 0], sizes = [1, 128], strides = [1, 1]} : vector<3x128xf32> to vector<1x128xf32>
      %cst_29 = arith.constant dense<0.000000e+00> : vector<128xf32>
      %57 = vector.multi_reduction <add>, %51, %cst_29 [0] : vector<64x128xf32> to vector<128xf32>
      %58 = vector.shape_cast %57 : vector<128xf32> to vector<1x128xf32>
      %cst_30 = arith.constant 6.400000e+01 : f32
      %59 = vector.broadcast %cst_30 : f32 to vector<1x128xf32>
      %60 = arith.divf %58, %59 : vector<1x128xf32>
      %61 = arith.mulf %51, %51 : vector<64x128xf32>
      %cst_31 = arith.constant dense<0.000000e+00> : vector<128xf32>
      %62 = vector.multi_reduction <add>, %61, %cst_31 [0] : vector<64x128xf32> to vector<128xf32>
      %63 = vector.shape_cast %62 : vector<128xf32> to vector<1x128xf32>
      %cst_32 = arith.constant 6.400000e+01 : f32
      %64 = vector.broadcast %cst_32 : f32 to vector<1x128xf32>
      %65 = arith.divf %63, %64 : vector<1x128xf32>
      %66 = arith.mulf %60, %60 : vector<1x128xf32>
      %67 = arith.subf %65, %66 : vector<1x128xf32>
      %cst_33 = arith.constant 0.000000e+00 : f32
      %68 = vector.broadcast %cst_33 : f32 to vector<1x128xf32>
      %69 = arith.maximumf %67, %68 : vector<1x128xf32>
      %cst_34 = arith.constant 9.99999974E-6 : f32
      %70 = vector.broadcast %cst_34 : f32 to vector<1x128xf32>
      %71 = arith.addf %69, %70 : vector<1x128xf32>
      %72 = math.rsqrt %71 : vector<1x128xf32>
      %73 = arith.mulf %55, %72 : vector<1x128xf32>
      %74 = vector.broadcast %73 : vector<1x128xf32> to vector<64x128xf32>
      %75 = arith.mulf %51, %74 : vector<64x128xf32>
      %76 = arith.mulf %60, %73 : vector<1x128xf32>
      %77 = arith.subf %56, %76 : vector<1x128xf32>
      %78 = vector.broadcast %77 : vector<1x128xf32> to vector<64x128xf32>
      %79 = arith.addf %75, %78 : vector<64x128xf32>
      scf.yield %79 : vector<64x128xf32>
    }
    %c4_i32_1 = arith.constant 4 : i32
    %c4 = arith.constant 4 : index
    %c0_2 = arith.constant 0 : index
    %c0_3 = arith.constant 0 : index
    %4 = vector.load %arg3[%c4, %c0_2, %c0_3] : memref<5x3x128xf32, #tpu.memory_space<vmem>>, vector<1x3x128xf32>
    %5 = vector.shape_cast %4 : vector<1x3x128xf32> to vector<3x128xf32>
    %6 = vector.extract_strided_slice %5 {offsets = [0, 0], sizes = [1, 128], strides = [1, 1]} : vector<3x128xf32> to vector<1x128xf32>
    %c0_4 = arith.constant 0 : index
    %c0_5 = arith.constant 0 : index
    %7 = vector.load %arg0[%c0_4, %c0_5] : memref<64x64xbf16, #tpu.memory_space<vmem>>, vector<64x64xbf16>
    %8 = arith.truncf %3 : vector<64x128xf32> to vector<64x128xbf16>
    %cst = arith.constant dense<0.000000e+00> : vector<64x128xf32>
    %9 = tpu.matmul %7, %8, %cst {dimension_numbers = #tpu.dot_dimension_numbers<[1], [0], [0], [1], [0, 0, 1, 1], [], []>} : vector<64x64xbf16>, vector<64x128xbf16>, vector<64x128xf32> -> vector<64x128xf32>
    %10 = arith.truncf %9 : vector<64x128xf32> to vector<64x128xbf16>
    %c4_6 = arith.constant 4 : index
    %c0_7 = arith.constant 0 : index
    %c0_8 = arith.constant 0 : index
    %11 = vector.load %arg2[%c4_6, %c0_7, %c0_8] : memref<5x128x128xbf16, #tpu.memory_space<vmem>>, vector<1x128x128xbf16>
    %12 = vector.shape_cast %11 : vector<1x128x128xbf16> to vector<128x128xbf16>
    %cst_9 = arith.constant dense<0.000000e+00> : vector<64x128xf32>
    %13 = tpu.matmul %10, %12, %cst_9 {dimension_numbers = #tpu.dot_dimension_numbers<[1], [0], [0], [1], [0, 0, 1, 1], [], []>} : vector<64x128xbf16>, vector<128x128xbf16>, vector<64x128xf32> -> vector<64x128xf32>
    %14 = vector.broadcast %6 : vector<1x128xf32> to vector<64x128xf32>
    %15 = arith.addf %13, %14 : vector<64x128xf32>
    %16 = tpu.iota {dimensions = array<i32: 1>} : vector<64x128xi32>
    %c4_i32_10 = arith.constant 4 : i32
    %17 = vector.broadcast %c4_i32_10 : i32 to vector<64x128xi32>
    %18 = arith.cmpi slt, %16, %17 : vector<64x128xi32>
    %cst_11 = arith.constant 0xFF800000 : f32
    %19 = vector.broadcast %cst_11 : f32 to vector<64x128xf32>
    %20 = arith.select %18, %15, %19 : vector<64x128xi1>, vector<64x128xf32>
    %cst_12 = arith.constant dense<0xFF800000> : vector<64xf32>
    %21 = vector.multi_reduction <maximumf>, %20, %cst_12 [1] : vector<64x128xf32> to vector<64xf32>
    %22 = vector.shape_cast %21 : vector<64xf32> to vector<64x1xf32>
    %23 = vector.broadcast %22 : vector<64x1xf32> to vector<64x128xf32>
    %24 = arith.subf %20, %23 : vector<64x128xf32>
    %25 = math.exp %24 : vector<64x128xf32>
    %cst_13 = arith.constant 0.000000e+00 : f32
    %26 = vector.broadcast %cst_13 : f32 to vector<64x128xf32>
    %27 = arith.select %18, %25, %26 : vector<64x128xi1>, vector<64x128xf32>
    %cst_14 = arith.constant dense<0.000000e+00> : vector<64xf32>
    %28 = vector.multi_reduction <add>, %27, %cst_14 [1] : vector<64x128xf32> to vector<64xf32>
    %29 = vector.shape_cast %28 : vector<64xf32> to vector<64x1xf32>
    %30 = math.log %29 : vector<64x1xf32>
    %31 = vector.broadcast %30 : vector<64x1xf32> to vector<64x128xf32>
    %32 = arith.subf %24, %31 : vector<64x128xf32>
    %cst_15 = arith.constant 0.000000e+00 : f32
    %33 = vector.broadcast %cst_15 : f32 to vector<64x128xf32>
    %34 = arith.select %18, %32, %33 : vector<64x128xi1>, vector<64x128xf32>
    %c0_16 = arith.constant 0 : index
    %c0_17 = arith.constant 0 : index
    %35 = vector.load %arg4[%c0_16, %c0_17] : memref<64x128xf32, #tpu.memory_space<vmem>>, vector<64x128xf32>
    tpu.vector_store %arg4[%c0_16, %c0_17], %34 {strides = array<i32>} : memref<64x128xf32, #tpu.memory_space<vmem>>, vector<64x128xf32>,
    return
  }
}

</mosaic_0001>

<llo_original>
// kernel: tpu_custom_call.1
$region0: #{tpu_custom_call.1}
  #allocation0 [shape = 'u32[]', space=smem, size = 0x4, offset = 0x4, fixed_abs, tag = 'smem constant byte address 0x4 - core index']
  #allocation1 [shape = 'u32[72,128]{1,0:T(1,128)}', space=vmem, size = 0x9000, scoped, tag = 'internal scratch']
  %s0 = inlined_call_operand.hbm [shape: bf16[64,64], index: 0, kind: input, shape index: {}]
  %s1 = inlined_call_operand.hbm [shape: bf16[64,128], index: 1, kind: input, shape index: {}]
  %s2 = inlined_call_operand.hbm [shape: bf16[5,128,128], index: 2, kind: input, shape index: {}]
  %s3 = inlined_call_operand.hbm [shape: f32[5,3,128], index: 3, kind: input, shape index: {}]
  %s4 = inlined_call_operand.hbm [shape: f32[64,128], index: 4, kind: output, shape index: {}]
  %s5 = sld [smem:[#allocation0]]
  $region49: #{tpu_custom_call.1} parent=0
    _
  %s7 = ssub.s32 1, %s5
  %s8 = scalar_select 0, %s7, %s5
  $region1: #{tpu_custom_call.1} parent=0
    #allocation2 [shape = 'u8[16384]{0}', space=vmem, size = 0x4000, scoped, tag = 'input window, operand 0, single buffered']
    #allocation3 [shape = 's32[1]{0}', space=sflag, size = 0x4, scoped, tag = 'scoped memory for tpu_custom_call.1']
    #allocation4 [shape = 's32[1]{0}', space=sflag, size = 0x4, scoped, tag = 'scoped memory for tpu_custom_call.1']
    #allocation5 [shape = 'u8[16384]{0}', space=vmem, size = 0x4000, scoped, tag = 'input window, operand 1, single buffered']
    #allocation6 [shape = 's32[1]{0}', space=sflag, size = 0x4, scoped, tag = 'scoped memory for tpu_custom_call.1']
    #allocation7 [shape = 'u8[163840]{0}', space=vmem, size = 0x28000, scoped, tag = 'input window, operand 2, single buffered']
    #allocation8 [shape = 'u8[10240]{0}', space=vmem, size = 0x2800, scoped, tag = 'input window, operand 3, single buffered']
    #allocation9 [shape = 's32[1]{0}', space=sflag, size = 0x4, scoped, tag = 'scoped memory for tpu_custom_call.1']
    #allocation10 [shape = 'u8[32768]{0}', space=vmem, size = 0x8000, scoped, tag = 'output window, operand 0, single buffered']
    %9 = vsyncpa [#allocation3], 0
    %10 = vsyncpa [#allocation6], 0
    %11 = vsyncpa [#allocation9], 0
    %12 = vsyncpa [#allocation4], 0
    // Predicated region
    $region2: #{tpu_custom_call.1} parent=1 // pred_check
      _
    $region3: #{tpu_custom_call.1} parent=1 // pred_check_branch
      %14 = sbr.rel (0) target = $region5
    $region4: #{tpu_custom_call.1} parent=1 // pred_region
      %16 = vsyncadd [#allocation3], 0
      %s17 = sshll.u32 %s0, 4
      %s18 = int_to_ptr.hbm [resolvable:$true] %s17
      %s19 = sshll.u32 [#allocation2], 4
      %s20 = int_to_ptr.vmem [resolvable:$true] %s19
      %25 = dma.hbm_to_vmem [thread:$0]  %s18, 512, %s20, [#allocation3], 64, 64, 4
    $region5: #{tpu_custom_call.1} parent=1 // pred_fallthru
      _
    // Predicated region
    $region6: #{tpu_custom_call.1} parent=1 // pred_check
      _
    $region7: #{tpu_custom_call.1} parent=1 // pred_check_branch
      %27 = sbr.rel (0) target = $region9
    $region8: #{tpu_custom_call.1} parent=1 // pred_region
      %29 = vsyncadd [#allocation6], 0
      %s30 = sshll.u32 %s1, 4
      %s31 = int_to_ptr.hbm [resolvable:$true] %s30
      %s32 = sshll.u32 [#allocation5], 4
      %s33 = int_to_ptr.vmem [resolvable:$true] %s32
      %38 = dma.hbm_to_vmem [thread:$0]  %s31, 512, %s33, [#allocation6], 64, 64, 4
    $region9: #{tpu_custom_call.1} parent=1 // pred_fallthru
      _
    // Predicated region
    $region10: #{tpu_custom_call.1} parent=1 // pred_check
      _
    $region11: #{tpu_custom_call.1} parent=1 // pred_check_branch
      %40 = sbr.rel (0) target = $region13
    $region12: #{tpu_custom_call.1} parent=1 // pred_region
      %42 = vsyncadd [#allocation6], 0
      %s43 = sshll.u32 %s2, 4
      %s44 = int_to_ptr.hbm [resolvable:$true] %s43
      %s45 = sshll.u32 [#allocation7], 4
      %s46 = int_to_ptr.vmem [resolvable:$true] %s45
      %51 = dma.hbm_to_vmem [thread:$0]  %s44, 5120, %s46, [#allocation6], 64, 64, 4
    $region13: #{tpu_custom_call.1} parent=1 // pred_fallthru
      _
    // Predicated region
    $region14: #{tpu_custom_call.1} parent=1 // pred_check
      _
    $region15: #{tpu_custom_call.1} parent=1 // pred_check_branch
      %53 = sbr.rel (0) target = $region17
    $region16: #{tpu_custom_call.1} parent=1 // pred_region
      %55 = vsyncadd [#allocation9], 0
      %s56 = sshll.u32 %s3, 4
      %s57 = int_to_ptr.hbm [resolvable:$true] %s56
      %s58 = sshll.u32 [#allocation8], 4
      %s59 = int_to_ptr.vmem [resolvable:$true] %s58
      %64 = dma.hbm_to_vmem [thread:$0]  %s57, 320, %s59, [#allocation9], 64, 64, 4
    $region17: #{tpu_custom_call.1} parent=1 // pred_fallthru
      _
    // Predicated region
    $region18: #{tpu_custom_call.1} parent=1 // pred_check
      _
    $region19: #{tpu_custom_call.1} parent=1 // pred_check_branch
      %66 = sbr.rel (0) target = $region21
    $region20: #{tpu_custom_call.1} parent=1 // pred_region
      %68 = dma.done [#allocation3], 512
    $region21: #{tpu_custom_call.1} parent=1 // pred_fallthru
      _
    // Predicated region
    $region22: #{tpu_custom_call.1} parent=1 // pred_check
      _
    $region23: #{tpu_custom_call.1} parent=1 // pred_check_branch
      %70 = sbr.rel (0) target = $region25
    $region24: #{tpu_custom_call.1} parent=1 // pred_region
      %72 = dma.done [#allocation6], 512
    $region25: #{tpu_custom_call.1} parent=1 // pred_fallthru
      _
    // Predicated region
    $region26: #{tpu_custom_call.1} parent=1 // pred_check
      _
    $region27: #{tpu_custom_call.1} parent=1 // pred_check_branch
      %74 = sbr.rel (0) target = $region29
    $region28: #{tpu_custom_call.1} parent=1 // pred_region
      %76 = dma.done [#allocation6], 5120
    $region29: #{tpu_custom_call.1} parent=1 // pred_fallthru
      _
    // Predicated region
    $region30: #{tpu_custom_call.1} parent=1 // pred_check
      _
    $region31: #{tpu_custom_call.1} parent=1 // pred_check_branch
      %78 = sbr.rel (0) target = $region33
    $region32: #{tpu_custom_call.1} parent=1 // pred_region
      %80 = dma.done [#allocation9], 320
    $region33: #{tpu_custom_call.1} parent=1 // pred_fallthru
      _
    %v82 = vld [vmem:[#allocation5] sm:$0xf]
    %v83 = vld [vmem:[#allocation5 + $0x4] sm:$0xf]
    %v84 = vld [vmem:[#allocation5 + $0x8] sm:$0xf]
    %v85 = vld [vmem:[#allocation5 + $0xc] sm:$0xf]
    %v86 = vld [vmem:[#allocation5 + $0x10] sm:$0xf]
    %v87 = vld [vmem:[#allocation5 + $0x14] sm:$0xf]
    %v88 = vld [vmem:[#allocation5 + $0x18] sm:$0xf]
    %v89 = vld [vmem:[#allocation5 + $0x1c] sm:$0xf]
    %v90 = vunpack.c.l.bf16 %v82
    %v91 = vunpack.c.l.bf16 %v83
    %v92 = vunpack.c.l.bf16 %v84
    %v93 = vunpack.c.l.bf16 %v85
    %v94 = vunpack.c.l.bf16 %v86
    %v95 = vunpack.c.l.bf16 %v87
    %v96 = vunpack.c.l.bf16 %v88
    %v97 = vunpack.c.l.bf16 %v89
    loop: start=0, step=1, limit=4
    $region34: #{tpu_custom_call.1} parent=1 // loop_pre_header
      _
    $region35: #{tpu_custom_call.1} parent=1 // loop_header
      %s99 = sphi 0, %s103
      %p100 = scmp.ge.s32.totalorder %s99, 4
      %v104 = vphi %v90, %v371
      %v105 = vphi %v91, %v372
      %v106 = vphi %v92, %v373
      %v107 = vphi %v93, %v374
      %v108 = vphi %v94, %v375
      %v109 = vphi %v95, %v376
      %v110 = vphi %v96, %v377
      %v111 = vphi %v97, %v378
    $region36: #{tpu_custom_call.1} parent=1 // loop_header_branch
      %102 = sbr.rel (%p100) target = $region40
    $region37: #{tpu_custom_call.1} parent=1 // loop_body
      %s112 = smul.u32 %s99, 4
      %s113 = scalar_lea.vmem [#allocation8], %s112
      %v114 = vld [vmem:[%s113] sm:$0x7]
      %v115 = vld [vmem:[#allocation2] sm:$0xf]
      %v116 = vld [vmem:[#allocation2 + $0x4] sm:$0xf]
      %v117 = vld [vmem:[#allocation2 + $0x8] sm:$0xf]
      %v118 = vld [vmem:[#allocation2 + $0xc] sm:$0xf]
      %v119 = vld [vmem:[#allocation2 + $0x10] sm:$0xf]
      %v120 = vld [vmem:[#allocation2 + $0x14] sm:$0xf]
      %v121 = vld [vmem:[#allocation2 + $0x18] sm:$0xf]
      %v122 = vld [vmem:[#allocation2 + $0x1c] sm:$0xf]
      %v123 = vpack.c.bf16 %v105, %v104
      %v124 = vpack.c.bf16 %v107, %v106
      %v125 = vpack.c.bf16 %v109, %v108
      %v126 = vpack.c.bf16 %v111, %v110
      %v135 = vunpack.c.l.b16 %v115
      %v136 = vunpack.c.l.b16 %v116
      %v137 = vunpack.c.l.b16 %v117
      %v138 = vunpack.c.l.b16 %v118
      %v139 = vunpack.c.l.b16 %v119
      %v140 = vunpack.c.l.b16 %v120
      %v141 = vunpack.c.l.b16 %v121
      %v142 = vunpack.c.l.b16 %v122
      %v143 = vpack.c.b16 %v136, %v135
      %v144 = vpack.c.b16 %v138, %v137
      %v145 = vpack.c.b16 %v140, %v139
      %v146 = vpack.c.b16 %v142, %v141
      %vm147 = vcmask 523264
      %v149 = vsel %vm147, %v143, 0
      %v152 = vsel %vm147, %v144, 0
      %v155 = vsel %vm147, %v145, 0
      %v158 = vsel %vm147, %v146, 0
      %160 = vmatpush.bf16.msra.mxu0 0
      %161 = vmatpush.bf16.msra.mxu0 0
      %162 = vmatpush.bf16.msra.mxu0 0
      %163 = vmatpush.bf16.msra.mxu0 0
      %164 = vmatpush.bf16.msra.mxu0 %v126
      %165 = vmatpush.bf16.msra.mxu0 %v125
      %166 = vmatpush.bf16.msra.mxu0 %v124
      %167 = vmatpush.bf16.msra.mxu0 %v123
      %168 = vmatmul.bf16.gmra.mxu0 %v149
      %v169 = vpop.f32.mrf.mxu0
      %v170 = vadd.f32 0.0, %v169
      %v171 = vpop.f32.mrf.mxu0
      %v172 = vadd.f32 0.0, %v171
      %173 = vmatmul.bf16.gmra.mxu0 %v152
      %v174 = vpop.f32.mrf.mxu0
      %v175 = vadd.f32 0.0, %v174
      %v176 = vpop.f32.mrf.mxu0
      %v177 = vadd.f32 0.0, %v176
      %178 = vmatmul.bf16.gmra.mxu0 %v155
      %v179 = vpop.f32.mrf.mxu0
      %v180 = vadd.f32 0.0, %v179
      %v181 = vpop.f32.mrf.mxu0
      %v182 = vadd.f32 0.0, %v181
      %183 = vmatmul.bf16.gmra.mxu0 %v158
      %v184 = vpop.f32.mrf.mxu0
      %v185 = vadd.f32 0.0, %v184
      %v186 = vpop.f32.mrf.mxu0
      %v187 = vadd.f32 0.0, %v186
      %188 = vdwg.mxu0
      %v189 = vpack.c.bf16 %v172, %v170
      %v190 = vpack.c.bf16 %v177, %v175
      %v191 = vpack.c.bf16 %v182, %v180
      %v192 = vpack.c.bf16 %v187, %v185
      %s193 = smul.u32 %s99, 16
      %s194 = smul.addr %s193, 4
      %s195 = scalar_lea.vmem [#allocation7], %s194
      %v196 = vld [vmem:[%s195] sm:$0xf]
      %v197 = vld [vmem:[%s195 + $0x4] sm:$0xf]
      %v198 = vld [vmem:[%s195 + $0x8] sm:$0xf]
      %v199 = vld [vmem:[%s195 + $0xc] sm:$0xf]
      %v200 = vld [vmem:[%s195 + $0x10] sm:$0xf]
      %v201 = vld [vmem:[%s195 + $0x14] sm:$0xf]
      %v202 = vld [vmem:[%s195 + $0x18] sm:$0xf]
      %v203 = vld [vmem:[%s195 + $0x1c] sm:$0xf]
      %v204 = vld [vmem:[%s195 + $0x20] sm:$0xf]
      %v205 = vld [vmem:[%s195 + $0x24] sm:$0xf]
      %v206 = vld [vmem:[%s195 + $0x28] sm:$0xf]
      %v207 = vld [vmem:[%s195 + $0x2c] sm:$0xf]
      %v208 = vld [vmem:[%s195 + $0x30] sm:$0xf]
      %v209 = vld [vmem:[%s195 + $0x34] sm:$0xf]
      %v210 = vld [vmem:[%s195 + $0x38] sm:$0xf]
      %v211 = vld [vmem:[%s195 + $0x3c] sm:$0xf]
      %v212 = vperm.slane %v114, 0
      %v229 = vunpack.c.l.b16 %v196
      %v230 = vunpack.c.l.b16 %v197
      %v231 = vunpack.c.l.b16 %v198
      %v232 = vunpack.c.l.b16 %v199
      %v233 = vunpack.c.l.b16 %v200
      %v234 = vunpack.c.l.b16 %v201
      %v235 = vunpack.c.l.b16 %v202
      %v236 = vunpack.c.l.b16 %v203
      %v237 = vunpack.c.l.b16 %v204
      %v238 = vunpack.c.l.b16 %v205
      %v239 = vunpack.c.l.b16 %v206
      %v240 = vunpack.c.l.b16 %v207
      %v241 = vunpack.c.l.b16 %v208
      %v242 = vunpack.c.l.b16 %v209
      %v243 = vunpack.c.l.b16 %v210
      %v244 = vunpack.c.l.b16 %v211
      %v245 = vpack.c.b16 %v230, %v229
      %v246 = vpack.c.b16 %v232, %v231
      %v247 = vpack.c.b16 %v234, %v233
      %v248 = vpack.c.b16 %v236, %v235
      %v249 = vpack.c.b16 %v238, %v237
      %v250 = vpack.c.b16 %v240, %v239
      %v251 = vpack.c.b16 %v242, %v241
      %v252 = vpack.c.b16 %v244, %v243
      %261 = vmatpush.bf16.msra.mxu0 %v252
      %262 = vmatpush.bf16.msra.mxu0 %v251
      %263 = vmatpush.bf16.msra.mxu0 %v250
      %264 = vmatpush.bf16.msra.mxu0 %v249
      %265 = vmatpush.bf16.msra.mxu0 %v248
      %266 = vmatpush.bf16.msra.mxu0 %v247
      %267 = vmatpush.bf16.msra.mxu0 %v246
      %268 = vmatpush.bf16.msra.mxu0 %v245
      %269 = vmatmul.bf16.gmra.mxu0 %v189
      %v270 = vpop.f32.mrf.mxu0
      %v271 = vadd.f32 %v212, %v270
      %v272 = vpop.f32.mrf.mxu0
      %v273 = vadd.f32 %v212, %v272
      %274 = vmatmul.bf16.gmra.mxu0 %v190
      %v275 = vpop.f32.mrf.mxu0
      %v276 = vadd.f32 %v212, %v275
      %v277 = vpop.f32.mrf.mxu0
      %v278 = vadd.f32 %v212, %v277
      %279 = vmatmul.bf16.gmra.mxu0 %v191
      %v280 = vpop.f32.mrf.mxu0
      %v281 = vadd.f32 %v212, %v280
      %v282 = vpop.f32.mrf.mxu0
      %v283 = vadd.f32 %v212, %v282
      %284 = vmatmul.bf16.gmra.mxu0 %v192
      %v285 = vpop.f32.mrf.mxu0
      %v286 = vadd.f32 %v212, %v285
      %v287 = vpop.f32.mrf.mxu0
      %v288 = vadd.f32 %v212, %v287
      %289 = vdwg.mxu0
      %v290 = vmax.f32 %v271, 0.0
      %v291 = vmax.f32 %v273, 0.0
      %v292 = vmax.f32 %v276, 0.0
      %v293 = vmax.f32 %v278, 0.0
      %v294 = vmax.f32 %v281, 0.0
      %v295 = vmax.f32 %v283, 0.0
      %v296 = vmax.f32 %v286, 0.0
      %v297 = vmax.f32 %v288, 0.0
      %v298 = vadd.f32 %v290, %v291
      %v299 = vadd.f32 %v298, %v292
      %v300 = vadd.f32 %v299, %v293
      %v301 = vadd.f32 %v300, %v294
      %v302 = vadd.f32 %v301, %v295
      %v303 = vadd.f32 %v302, %v296
      %v304 = vadd.f32 %v303, %v297
      %v305 = vrot.slane %v304, 4
      %v306 = vadd.f32 %v304, %v305
      %v307 = vrot.slane %v306, 2
      %v308 = vadd.f32 %v306, %v307
      %v309 = vrot.slane %v308, 1
      %v310 = vadd.f32 %v308, %v309
      %v311 = vrcp.pop 64.0
      %v312 = vmul.f32 64.0, %v311
      %v313 = vsub.f32 1.0, %v312
      %v314 = vmul.f32 %v311, %v313
      %v315 = vadd.f32 %v311, %v314
      %vm316 = vweird.f32 %v311
      %v317 = vsel %vm316, %v311, %v315
      %v318 = vmul.f32 %v310, %v317
      %v319 = vmul.f32 %v290, %v290
      %v320 = vmul.f32 %v291, %v291
      %v321 = vmul.f32 %v292, %v292
      %v322 = vmul.f32 %v293, %v293
      %v323 = vmul.f32 %v294, %v294
      %v324 = vmul.f32 %v295, %v295
      %v325 = vmul.f32 %v296, %v296
      %v326 = vmul.f32 %v297, %v297
      %v327 = vadd.f32 %v319, %v320
      %v328 = vadd.f32 %v327, %v321
      %v329 = vadd.f32 %v328, %v322
      %v330 = vadd.f32 %v329, %v323
      %v331 = vadd.f32 %v330, %v324
      %v332 = vadd.f32 %v331, %v325
      %v333 = vadd.f32 %v332, %v326
      %v334 = vrot.slane %v333, 4
      %v335 = vadd.f32 %v333, %v334
      %v336 = vrot.slane %v335, 2
      %v337 = vadd.f32 %v335, %v336
      %v338 = vrot.slane %v337, 1
      %v339 = vadd.f32 %v337, %v338
      %v340 = vmul.f32 %v339, %v317
      %v341 = vmul.f32 %v318, %v318
      %v342 = vsub.f32 %v340, %v341
      %v343 = vmax.f32 %v342, 0.0
      %v344 = vadd.f32 %v343, 1e-05
      %v345 = vrsqrt.pop %v344
      %v346 = vmul.f32 %v345, %v344
      %v347 = vmul.f32 %v346, %v345
      %v348 = vmul.f32 0.5, %v347
      %v349 = vsub.f32 1.5, %v348
      %v350 = vmul.f32 %v345, %v349
      %vm351 = vweird.f32 %v344
      %vm352 = vweird.f32 %v345
      %vm353 = vmor %vm351, %vm352
      %v354 = vsel %vm353, %v345, %v350
      %v355 = vmul.f32 %v114, %v354
      %v356 = vperm.slane %v355, 1
      %v357 = vmul.f32 %v290, %v356
      %v358 = vmul.f32 %v291, %v356
      %v359 = vmul.f32 %v292, %v356
      %v360 = vmul.f32 %v293, %v356
      %v361 = vmul.f32 %v294, %v356
      %v362 = vmul.f32 %v295, %v356
      %v363 = vmul.f32 %v296, %v356
      %v364 = vmul.f32 %v297, %v356
      %v365 = vmul.f32 %v318, %v355
      %v367 = vrot.slane %v365, 7
      %v369 = vsub.f32 %v114, %v367
      %v370 = vperm.slane %v369, 2
      %v371 = vadd.f32 %v357, %v370
      %v372 = vadd.f32 %v358, %v370
      %v373 = vadd.f32 %v359, %v370
      %v374 = vadd.f32 %v360, %v370
      %v375 = vadd.f32 %v361, %v370
      %v376 = vadd.f32 %v362, %v370
      %v377 = vadd.f32 %v363, %v370
      %v378 = vadd.f32 %v364, %v370
    $region38: #{tpu_custom_call.1} parent=1 // loop_footer
      %s103 = sadd.s32 1, %s99
    $region39: #{tpu_custom_call.1} parent=1 // loop_footer_branch
      %98 = sbr.rel target = $region35
    $region40: #{tpu_custom_call.1} parent=1 // loop_exit
      _
    %s379 = scalar_lea.vmem [#allocation8], 16
    %v380 = vld [vmem:[%s379] sm:$0x7]
    %v381 = vld [vmem:[#allocation2] sm:$0xf]
    %v382 = vld [vmem:[#allocation2 + $0x4] sm:$0xf]
    %v383 = vld [vmem:[#allocation2 + $0x8] sm:$0xf]
    %v384 = vld [vmem:[#allocation2 + $0xc] sm:$0xf]
    %v385 = vld [vmem:[#allocation2 + $0x10] sm:$0xf]
    %v386 = vld [vmem:[#allocation2 + $0x14] sm:$0xf]
    %v387 = vld [vmem:[#allocation2 + $0x18] sm:$0xf]
    %v388 = vld [vmem:[#allocation2 + $0x1c] sm:$0xf]
    %v389 = vpack.c.bf16 %v105, %v104
    %v390 = vpack.c.bf16 %v107, %v106
    %v391 = vpack.c.bf16 %v109, %v108
    %v392 = vpack.c.bf16 %v111, %v110
    %v401 = vunpack.c.l.b16 %v381
    %v402 = vunpack.c.l.b16 %v382
    %v403 = vunpack.c.l.b16 %v383
    %v404 = vunpack.c.l.b16 %v384
    %v405 = vunpack.c.l.b16 %v385
    %v406 = vunpack.c.l.b16 %v386
    %v407 = vunpack.c.l.b16 %v387
    %v408 = vunpack.c.l.b16 %v388
    %v409 = vpack.c.b16 %v402, %v401
    %v410 = vpack.c.b16 %v404, %v403
    %v411 = vpack.c.b16 %v406, %v405
    %v412 = vpack.c.b16 %v408, %v407
    %vm413 = vcmask 523264
    %v415 = vsel %vm413, %v409, 0
    %v418 = vsel %vm413, %v410, 0
    %v421 = vsel %vm413, %v411, 0
    %v424 = vsel %vm413, %v412, 0
    %426 = vmatpush.bf16.msra.mxu0 0
    %427 = vmatpush.bf16.msra.mxu0 0
    %428 = vmatpush.bf16.msra.mxu0 0
    %429 = vmatpush.bf16.msra.mxu0 0
    %430 = vmatpush.bf16.msra.mxu0 %v392
    %431 = vmatpush.bf16.msra.mxu0 %v391
    %432 = vmatpush.bf16.msra.mxu0 %v390
    %433 = vmatpush.bf16.msra.mxu0 %v389
    %434 = vmatmul.bf16.gmra.mxu0 %v415
    %v435 = vpop.f32.mrf.mxu0
    %v436 = vadd.f32 0.0, %v435
    %v437 = vpop.f32.mrf.mxu0
    %v438 = vadd.f32 0.0, %v437
    %439 = vmatmul.bf16.gmra.mxu0 %v418
    %v440 = vpop.f32.mrf.mxu0
    %v441 = vadd.f32 0.0, %v440
    %v442 = vpop.f32.mrf.mxu0
    %v443 = vadd.f32 0.0, %v442
    %444 = vmatmul.bf16.gmra.mxu0 %v421
    %v445 = vpop.f32.mrf.mxu0
    %v446 = vadd.f32 0.0, %v445
    %v447 = vpop.f32.mrf.mxu0
    %v448 = vadd.f32 0.0, %v447
    %449 = vmatmul.bf16.gmra.mxu0 %v424
    %v450 = vpop.f32.mrf.mxu0
    %v451 = vadd.f32 0.0, %v450
    %v452 = vpop.f32.mrf.mxu0
    %v453 = vadd.f32 0.0, %v452
    %454 = vdwg.mxu0
    %v455 = vpack.c.bf16 %v438, %v436
    %v456 = vpack.c.bf16 %v443, %v441
    %v457 = vpack.c.bf16 %v448, %v446
    %v458 = vpack.c.bf16 %v453, %v451
    %s459 = scalar_lea.vmem [#allocation7], 256
    %v460 = vld [vmem:[%s459] sm:$0xf]
    %v461 = vld [vmem:[%s459 + $0x4] sm:$0xf]
    %v462 = vld [vmem:[%s459 + $0x8] sm:$0xf]
    %v463 = vld [vmem:[%s459 + $0xc] sm:$0xf]
    %v464 = vld [vmem:[%s459 + $0x10] sm:$0xf]
    %v465 = vld [vmem:[%s459 + $0x14] sm:$0xf]
    %v466 = vld [vmem:[%s459 + $0x18] sm:$0xf]
    %v467 = vld [vmem:[%s459 + $0x1c] sm:$0xf]
    %v468 = vld [vmem:[%s459 + $0x20] sm:$0xf]
    %v469 = vld [vmem:[%s459 + $0x24] sm:$0xf]
    %v470 = vld [vmem:[%s459 + $0x28] sm:$0xf]
    %v471 = vld [vmem:[%s459 + $0x2c] sm:$0xf]
    %v472 = vld [vmem:[%s459 + $0x30] sm:$0xf]
    %v473 = vld [vmem:[%s459 + $0x34] sm:$0xf]
    %v474 = vld [vmem:[%s459 + $0x38] sm:$0xf]
    %v475 = vld [vmem:[%s459 + $0x3c] sm:$0xf]
    %v476 = vperm.slane %v380, 0
    %v493 = vunpack.c.l.b16 %v460
    %v494 = vunpack.c.l.b16 %v461
    %v495 = vunpack.c.l.b16 %v462
    %v496 = vunpack.c.l.b16 %v463
    %v497 = vunpack.c.l.b16 %v464
    %v498 = vunpack.c.l.b16 %v465
    %v499 = vunpack.c.l.b16 %v466
    %v500 = vunpack.c.l.b16 %v467
    %v501 = vunpack.c.l.b16 %v468
    %v502 = vunpack.c.l.b16 %v469
    %v503 = vunpack.c.l.b16 %v470
    %v504 = vunpack.c.l.b16 %v471
    %v505 = vunpack.c.l.b16 %v472
    %v506 = vunpack.c.l.b16 %v473
    %v507 = vunpack.c.l.b16 %v474
    %v508 = vunpack.c.l.b16 %v475
    %v509 = vpack.c.b16 %v494, %v493
    %v510 = vpack.c.b16 %v496, %v495
    %v511 = vpack.c.b16 %v498, %v497
    %v512 = vpack.c.b16 %v500, %v499
    %v513 = vpack.c.b16 %v502, %v501
    %v514 = vpack.c.b16 %v504, %v503
    %v515 = vpack.c.b16 %v506, %v505
    %v516 = vpack.c.b16 %v508, %v507
    %525 = vmatpush.bf16.msra.mxu0 %v516
    %526 = vmatpush.bf16.msra.mxu0 %v515
    %527 = vmatpush.bf16.msra.mxu0 %v514
    %528 = vmatpush.bf16.msra.mxu0 %v513
    %529 = vmatpush.bf16.msra.mxu0 %v512
    %530 = vmatpush.bf16.msra.mxu0 %v511
    %531 = vmatpush.bf16.msra.mxu0 %v510
    %532 = vmatpush.bf16.msra.mxu0 %v509
    %533 = vmatmul.bf16.gmra.mxu0 %v455
    %v534 = vpop.f32.mrf.mxu0
    %v535 = vadd.f32 %v476, %v534
    %v536 = vpop.f32.mrf.mxu0
    %v537 = vadd.f32 %v476, %v536
    %538 = vmatmul.bf16.gmra.mxu0 %v456
    %v539 = vpop.f32.mrf.mxu0
    %v540 = vadd.f32 %v476, %v539
    %v541 = vpop.f32.mrf.mxu0
    %v542 = vadd.f32 %v476, %v541
    %543 = vmatmul.bf16.gmra.mxu0 %v457
    %v544 = vpop.f32.mrf.mxu0
    %v545 = vadd.f32 %v476, %v544
    %v546 = vpop.f32.mrf.mxu0
    %v547 = vadd.f32 %v476, %v546
    %548 = vmatmul.bf16.gmra.mxu0 %v458
    %v549 = vpop.f32.mrf.mxu0
    %v550 = vadd.f32 %v476, %v549
    %v551 = vpop.f32.mrf.mxu0
    %v552 = vadd.f32 %v476, %v551
    %553 = vdwg.mxu0
    %v554 = vlaneseq
    %v555 = vand.u32 %v554, 127
    %vm556 = vcmp.lt.s32.totalorder %v555, 4
    %v557 = vsel %vm556, %v535, -inf
    %v558 = vsel %vm556, %v537, -inf
    %v559 = vsel %vm556, %v540, -inf
    %v560 = vsel %vm556, %v542, -inf
    %v561 = vsel %vm556, %v545, -inf
    %v562 = vsel %vm556, %v547, -inf
    %v563 = vsel %vm556, %v550, -inf
    %v564 = vsel %vm556, %v552, -inf
    %565 = vmax.xlane.f32.xlu0 %v557
    %v566 = vpop.xlane.xlu0 %565
    %567 = vmax.xlane.f32.xlu0 %v558
    %v568 = vpop.xlane.xlu0 %567
    %569 = vmax.xlane.f32.xlu0 %v559
    %v570 = vpop.xlane.xlu0 %569
    %571 = vmax.xlane.f32.xlu0 %v560
    %v572 = vpop.xlane.xlu0 %571
    %573 = vmax.xlane.f32.xlu0 %v561
    %v574 = vpop.xlane.xlu0 %573
    %575 = vmax.xlane.f32.xlu0 %v562
    %v576 = vpop.xlane.xlu0 %575
    %577 = vmax.xlane.f32.xlu0 %v563
    %v578 = vpop.xlane.xlu0 %577
    %579 = vmax.xlane.f32.xlu0 %v564
    %v580 = vpop.xlane.xlu0 %579
    %v581 = vsub.f32 %v557, %v566
    %v582 = vsub.f32 %v558, %v568
    %v583 = vsub.f32 %v559, %v570
    %v584 = vsub.f32 %v560, %v572
    %v585 = vsub.f32 %v561, %v574
    %v586 = vsub.f32 %v562, %v576
    %v587 = vsub.f32 %v563, %v578
    %v588 = vsub.f32 %v564, %v580
    %v589 = vmul.f32 %v581, 1.442695
    %v590 = vpow.pop %v589
    %v591 = vmul.f32 %v582, 1.442695
    %v592 = vpow.pop %v591
    %v593 = vmul.f32 %v583, 1.442695
    %v594 = vpow.pop %v593
    %v595 = vmul.f32 %v584, 1.442695
    %v596 = vpow.pop %v595
    %v597 = vmul.f32 %v585, 1.442695
    %v598 = vpow.pop %v597
    %v599 = vmul.f32 %v586, 1.442695
    %v600 = vpow.pop %v599
    %v601 = vmul.f32 %v587, 1.442695
    %v602 = vpow.pop %v601
    %v603 = vmul.f32 %v588, 1.442695
    %v604 = vpow.pop %v603
    %v605 = vsel %vm556, %v590, 0.0
    %v606 = vsel %vm556, %v592, 0.0
    %v607 = vsel %vm556, %v594, 0.0
    %v608 = vsel %vm556, %v596, 0.0
    %v609 = vsel %vm556, %v598, 0.0
    %v610 = vsel %vm556, %v600, 0.0
    %v611 = vsel %vm556, %v602, 0.0
    %v612 = vsel %vm556, %v604, 0.0
    %613 = vadd.xlane.f32.xlu0 %v605
    %v614 = vpop.xlane.xlu0 %613
    %615 = vadd.xlane.f32.xlu0 %v606
    %v616 = vpop.xlane.xlu0 %615
    %617 = vadd.xlane.f32.xlu0 %v607
    %v618 = vpop.xlane.xlu0 %617
    %619 = vadd.xlane.f32.xlu0 %v608
    %v620 = vpop.xlane.xlu0 %619
    %621 = vadd.xlane.f32.xlu0 %v609
    %v622 = vpop.xlane.xlu0 %621
    %623 = vadd.xlane.f32.xlu0 %v610
    %v624 = vpop.xlane.xlu0 %623
    %625 = vadd.xlane.f32.xlu0 %v611
    %v626 = vpop.xlane.xlu0 %625
    %627 = vadd.xlane.f32.xlu0 %v612
    %v628 = vpop.xlane.xlu0 %627
    %v629 = vlog2.pop %v614
    %v630 = vmul.f32 %v629, 0.6931472
    %v631 = vlog2.pop %v616
    %v632 = vmul.f32 %v631, 0.6931472
    %v633 = vlog2.pop %v618
    %v634 = vmul.f32 %v633, 0.6931472
    %v635 = vlog2.pop %v620
    %v636 = vmul.f32 %v635, 0.6931472
    %v637 = vlog2.pop %v622
    %v638 = vmul.f32 %v637, 0.6931472
    %v639 = vlog2.pop %v624
    %v640 = vmul.f32 %v639, 0.6931472
    %v641 = vlog2.pop %v626
    %v642 = vmul.f32 %v641, 0.6931472
    %v643 = vlog2.pop %v628
    %v644 = vmul.f32 %v643, 0.6931472
    %v645 = vsub.f32 %v581, %v630
    %v646 = vsub.f32 %v582, %v632
    %v647 = vsub.f32 %v583, %v634
    %v648 = vsub.f32 %v584, %v636
    %v649 = vsub.f32 %v585, %v638
    %v650 = vsub.f32 %v586, %v640
    %v651 = vsub.f32 %v587, %v642
    %v652 = vsub.f32 %v588, %v644
    %v653 = vsel %vm556, %v645, 0.0
    %v654 = vsel %vm556, %v646, 0.0
    %v655 = vsel %vm556, %v647, 0.0
    %v656 = vsel %vm556, %v648, 0.0
    %v657 = vsel %vm556, %v649, 0.0
    %v658 = vsel %vm556, %v650, 0.0
    %v659 = vsel %vm556, %v651, 0.0
    %v660 = vsel %vm556, %v652, 0.0
    %661 = vst [vmem:[#allocation10] sm:$0xff] %v653
    %662 = vst [vmem:[#allocation10 + $0x8] sm:$0xff] %v654
    %663 = vst [vmem:[#allocation10 + $0x10] sm:$0xff] %v655
    %664 = vst [vmem:[#allocation10 + $0x18] sm:$0xff] %v656
    %665 = vst [vmem:[#allocation10 + $0x20] sm:$0xff] %v657
    %666 = vst [vmem:[#allocation10 + $0x28] sm:$0xff] %v658
    %667 = vst [vmem:[#allocation10 + $0x30] sm:$0xff] %v659
    %668 = vst [vmem:[#allocation10 + $0x38] sm:$0xff] %v660
    // Predicated region
    $region41: #{tpu_custom_call.1} parent=1 // pred_check
      _
    $region42: #{tpu_custom_call.1} parent=1 // pred_check_branch
      %670 = sbr.rel (0) target = $region44
    $region43: #{tpu_custom_call.1} parent=1 // pred_region
      %672 = vsyncadd [#allocation4], 0
      %s673 = sshll.u32 [#allocation10], 4
      %s674 = int_to_ptr.vmem [resolvable:$true] %s673
      %s675 = sshll.u32 %s4, 4
      %s676 = int_to_ptr.hbm [resolvable:$true] %s675
      %681 = dma.vmem_to_hbm [thread:$0]  %s674, 1024, %s676, [#allocation4], 128, 128, 8
    $region44: #{tpu_custom_call.1} parent=1 // pred_fallthru
      _
    // Predicated region
    $region45: #{tpu_custom_call.1} parent=1 // pred_check
      _
    $region46: #{tpu_custom_call.1} parent=1 // pred_check_branch
      %683 = sbr.rel (0) target = $region48
    $region47: #{tpu_custom_call.1} parent=1 // pred_region
      %685 = dma.done [#allocation4], 1024
    $region48: #{tpu_custom_call.1} parent=1 // pred_fallthru
      _
    %686 = vsyncpa [#allocation3], 1
    %687 = vsyncpa [#allocation6], 1
    %688 = vsyncpa [#allocation9], 1
    %689 = vsyncpa [#allocation4], 1

</llo_original>
